<compile_context>
chip_gen: v6e
topology: v6e:2x2x1
jax: 0.10.0
libtpu: 0.0.40
codegen_flags: <defaults>
</compile_context>

<pallas_src>
import functools

import jax
import jax.numpy as jnp
from jax.experimental import pallas as pl
from jax.experimental.pallas import tpu as pltpu

_MIB = 1024 * 1024


def _round_up(x, m):
    return ((x + m - 1) // m) * m


def _vmem_capacity_bytes():
    """Per-core VMEM capacity (v5e/v6e: 128 MiB, v7x: 64 MiB); safe fallback."""
    try:
        return int(pltpu.get_tpu_info().vmem_capacity_bytes)
    except Exception:
        return 128 * _MIB


def _auto_block_rows(n_rows, n_classes, itemsize, vmem_capacity):
    """Row tile sized against both HBM step-overhead and the VMEM/temporaries budget."""
    sub_mult = 8 if itemsize >= 4 else 16            # f32 vs bf16 sublane packing
    if n_rows <= sub_mult:
        return n_rows                                # block == full array, always legal
    c_pad = _round_up(n_classes, 128)                # lane-padded width in VMEM
    small_vmem = vmem_capacity <= 96 * _MIB          # v7x-like: 64 MiB VMEM, 3.2 TB/s HBM
    # HBM-side budget: big enough to amortize ~0.35 us/grid-step against HBM BW.
    target_hbm_bytes = (6 if small_vmem else 12) * _MIB
    rows_hbm = target_hbm_bytes // max(1, n_classes * itemsize)
    # VMEM-side budget: 2x double-buffered input block + ~5 full-width f32/int32
    # compiler temporaries (f32 upcast, exp, class iota, one-hot where, ...).
    vmem_budget = (vmem_capacity * (55 if small_vmem else 50)) // 100
    per_row_vmem = c_pad * (2 * itemsize + 5 * 4)
    rows_vmem = vmem_budget // max(1, per_row_vmem)
    rows = max(sub_mult, (min(rows_hbm, rows_vmem) // sub_mult) * sub_mult)
    if small_vmem:
        # 2 TensorCores per chip on v7x: keep >= 2 blocks so both cores get work.
        rows = min(rows, _round_up(pl.cdiv(n_rows, 2), sub_mult))
    if rows >= n_rows:
        return n_rows                                # single full-array block
    return rows


def _normalize_block_rows(block_rows, n_rows, itemsize):
    """Round user-supplied block_rows to the sublane multiple (Mosaic-legal)."""
    sub_mult = 8 if itemsize >= 4 else 16
    block_rows = int(block_rows)
    if block_rows >= n_rows:
        return n_rows                                # full-array block
    return max(sub_mult, _round_up(block_rows, sub_mult))


def _pick_vmem_limit(block_rows, n_classes, itemsize, vmem_capacity):
    """Scoped VMEM limit scaled with the block (2x dbl-buffered input + f32 temps)."""
    c_pad = _round_up(n_classes, 128)
    rows_pad = _round_up(block_rows, 8)
    need = rows_pad * c_pad * (2 * itemsize + 6 * 4) + 2 * _MIB
    return int(min(max(32 * _MIB, need), (vmem_capacity * 3) // 4))


def _ls_ce_partials_kernel(preds_ref, target_ref, out_ref, *, block_rows, n_rows):
    x = preds_ref[...].astype(jnp.float32)                    # (tb, C) f32
    tb, C = x.shape

    # Row-wise log-sum-exp (numerically stable), no log_softmax materialization.
    m = jnp.max(x, axis=-1, keepdims=True)                    # (tb, 1)  XLU
    e = jnp.exp(x - m)                                        # (tb, C)  EUP
    z = jnp.sum(e, axis=-1, keepdims=True)                    # (tb, 1)
    lse = m + jnp.log(z)                                      # (tb, 1)
    s = jnp.sum(x, axis=-1, keepdims=True)                    # (tb, 1)  sum_c x

    # x[row, target[row]] via a fused one-hot mask (no gather on TPU).
    cls_ids = jax.lax.broadcasted_iota(jnp.int32, (tb, C), 1)
    tgt = target_ref[...]                                     # (tb, 1) int32
    x_tgt = jnp.sum(jnp.where(cls_ids == tgt, x, 0.0), axis=-1, keepdims=True)

    # Row-validity mask for the ragged last block.  MUST be a where(): padded rows
    # can hold Inf/NaN and multiply-by-mask would leak NaN into the partial sums.
    row0 = pl.program_id(0) * block_rows
    row_ids = row0 + jax.lax.broadcasted_iota(jnp.int32, (tb, 1), 0)
    valid = row_ids < n_rows

    neg_sum = jnp.where(valid, jnp.float32(C) * lse - s, 0.0)  # -sum_c log_softmax
    neg_tgt = jnp.where(valid, lse - x_tgt, 0.0)               # -log_softmax[target]

    p_sum = jnp.sum(neg_sum)
    p_tgt = jnp.sum(neg_tgt)

    # Lane-dense (1, 8, 128) partials tile; wrapper reads [blk, 0, 0] and [blk, 0, 1].
    # Single lane-iota epilogue (sublanes 1..7 hold harmless duplicates).  Kept as
    # iota+where rather than scalar element stores to VMEM for Mosaic portability;
    # this is only a handful of vreg ops per grid step.
    lane = jax.lax.broadcasted_iota(jnp.int32, (1, 8, 128), 2)
    out_ref[...] = jnp.where(lane == 0, p_sum,
                             jnp.where(lane == 1, p_tgt, 0.0))


def label_smoothing_cross_entropy(preds, target, *, epsilon=0.1, reduction="mean",
                                  block_rows=None):
    """preds: (N, C) float (f32 or bf16), target: (N,) int. Returns a scalar f32."""
    assert preds.ndim == 2, "kernel implements the 2-D (N, C) case"
    if reduction not in ("mean", "sum"):
        raise NotImplementedError("reduction='none' not implemented")  # TODO(synk)
    N, C = preds.shape
    itemsize = jnp.dtype(preds.dtype).itemsize
    vmem_capacity = _vmem_capacity_bytes()
    if block_rows is None:
        block_rows = _auto_block_rows(N, C, itemsize, vmem_capacity)
    else:
        block_rows = _normalize_block_rows(block_rows, N, itemsize)
    num_blocks = pl.cdiv(N, block_rows)
    target2d = target.astype(jnp.int32).reshape(N, 1)

    kernel = functools.partial(_ls_ce_partials_kernel,
                               block_rows=block_rows, n_rows=N)

    cost = pl.CostEstimate(
        flops=int(8 * N * C),
        transcendentals=int(N * C),
        bytes_accessed=int(N * C * itemsize + N * 4 + num_blocks * 8 * 128 * 4),
    )

    partials = pl.pallas_call(
        kernel,
        out_shape=jax.ShapeDtypeStruct((num_blocks, 8, 128), jnp.float32),
        grid_spec=pltpu.PrefetchScalarGridSpec(
            num_scalar_prefetch=0,
            grid=(num_blocks,),
            in_specs=[
                pl.BlockSpec((block_rows, C), lambda i: (i, 0)),
                pl.BlockSpec((block_rows, 1), lambda i: (i, 0)),
            ],
            out_specs=pl.BlockSpec((1, 8, 128), lambda i: (i, 0, 0)),
        ),
        compiler_params=pltpu.CompilerParams(
            # TODO(synk): on v7x try pltpu.CORE_PARALLEL here (num_blocks >= 2 is
            # already enforced by _auto_block_rows on 64-MiB chips) to genuinely
            # shard rows across both TensorCores.
            dimension_semantics=("parallel",),
            vmem_limit_bytes=_pick_vmem_limit(block_rows, C, itemsize, vmem_capacity),
        ),
        cost_estimate=cost,
    )(preds, target2d)

    sum_neg_sum = jnp.sum(partials[:, 0, 0])
    sum_neg_tgt = jnp.sum(partials[:, 0, 1])
    if reduction == "mean":
        loss_red = sum_neg_sum / N
        nll_red = sum_neg_tgt / N
    else:  # 'sum'
        loss_red = sum_neg_sum
        nll_red = sum_neg_tgt
    return epsilon * (loss_red / C) + (1.0 - epsilon) * nll_red


def _reference(preds, target, epsilon=0.1, reduction="mean"):
    logp = jax.nn.log_softmax(preds.astype(jnp.float32), axis=-1)
    n = preds.shape[-1]
    neg_sum = -jnp.sum(logp, axis=-1)
    nll_per = -logp[jnp.arange(preds.shape[0]), target]
    if reduction == "mean":
        loss, nll = jnp.mean(neg_sum), jnp.mean(nll_per)
    else:
        loss, nll = jnp.sum(neg_sum), jnp.sum(nll_per)
    return epsilon * (loss / n) + (1 - epsilon) * nll


if __name__ == "__main__":
    key = jax.random.PRNGKey(0)
    k1, k2 = jax.random.split(key)
    N, C = 20, 32
    preds = jax.random.normal(k1, (N, C), dtype=jnp.float32)
    target = jax.random.randint(k2, (N,), 0, C, dtype=jnp.int32)

    # f32, auto tiling: whole (20, 32) array fits one block -> single grid step,
    # no forced pipelining overhead.
    out = label_smoothing_cross_entropy(preds, target, epsilon=0.1, reduction="mean")
    out = jax.block_until_ready(out)
    ref = _reference(preds, target, 0.1, "mean")
    assert jnp.allclose(out, ref, rtol=1e-4, atol=1e-4), (out, ref)

    # bf16 input (halves HBM traffic), explicit 16-row tile -> grid of 2 with a
    # ragged, in-kernel-masked last block; 'sum' reduction.
    preds_bf16 = preds.astype(jnp.bfloat16)
    out2 = label_smoothing_cross_entropy(preds_bf16, target, epsilon=0.1,
                                         reduction="sum", block_rows=16)
    out2 = jax.block_until_ready(out2)
    ref2 = _reference(preds_bf16, target, 0.1, "sum")
    assert jnp.allclose(out2, ref2, rtol=1e-4, atol=1e-4), (out2, ref2)

    print("KERNEL_OK")
</pallas_src>

<mosaic_0001>
module attributes {stable_mosaic.version = 11 : i64} {
  func.func @_ls_ce_partials_kernel(%arg0: i32, %arg1: memref<20x32xf32, #tpu.memory_space<vmem>>, %arg2: memref<20x1xi32, #tpu.memory_space<vmem>>, %arg3: memref<1x8x128xf32, #tpu.memory_space<vmem>>) attributes {dimension_semantics = [#tpu.dimension_semantics<parallel>], iteration_bounds = array<i64: 1>, scalar_prefetch = 0 : i64, scratch_operands = 0 : i64, tpu.core_type = #tpu.core_type<tc>, window_params = [{transform_indices = @transform_0, window_bounds = array<i64: 20, 32>}, {transform_indices = @transform_1, window_bounds = array<i64: 20, 1>}, {transform_indices = @transform_2, window_bounds = array<i64: 1, 8, 128>}]} {
    %c0 = arith.constant 0 : index
    %c0_0 = arith.constant 0 : index
    %0 = vector.load %arg1[%c0, %c0_0] : memref<20x32xf32, #tpu.memory_space<vmem>>, vector<20x32xf32>
    %cst = arith.constant dense<0xFF800000> : vector<20xf32>
    %1 = vector.multi_reduction <maximumf>, %0, %cst [1] : vector<20x32xf32> to vector<20xf32>
    %2 = vector.shape_cast %1 : vector<20xf32> to vector<20x1xf32>
    %3 = vector.broadcast %2 : vector<20x1xf32> to vector<20x32xf32>
    %4 = arith.subf %0, %3 : vector<20x32xf32>
    %5 = math.exp %4 : vector<20x32xf32>
    %cst_1 = arith.constant dense<0.000000e+00> : vector<20xf32>
    %6 = vector.multi_reduction <add>, %5, %cst_1 [1] : vector<20x32xf32> to vector<20xf32>
    %7 = vector.shape_cast %6 : vector<20xf32> to vector<20x1xf32>
    %8 = math.log %7 : vector<20x1xf32>
    %9 = arith.addf %2, %8 : vector<20x1xf32>
    %cst_2 = arith.constant dense<0.000000e+00> : vector<20xf32>
    %10 = vector.multi_reduction <add>, %0, %cst_2 [1] : vector<20x32xf32> to vector<20xf32>
    %11 = vector.shape_cast %10 : vector<20xf32> to vector<20x1xf32>
    %12 = tpu.iota {dimensions = array<i32: 1>} : vector<20x32xi32>
    %c0_3 = arith.constant 0 : index
    %c0_4 = arith.constant 0 : index
    %13 = vector.load %arg2[%c0_3, %c0_4] : memref<20x1xi32, #tpu.memory_space<vmem>>, vector<20x1xi32>
    %14 = vector.broadcast %13 : vector<20x1xi32> to vector<20x32xi32>
    %15 = arith.cmpi eq, %12, %14 : vector<20x32xi32>
    %cst_5 = arith.constant 0.000000e+00 : f32
    %16 = vector.broadcast %cst_5 : f32 to vector<20x32xf32>
    %17 = arith.select %15, %0, %16 : vector<20x32xi1>, vector<20x32xf32>
    %cst_6 = arith.constant dense<0.000000e+00> : vector<20xf32>
    %18 = vector.multi_reduction <add>, %17, %cst_6 [1] : vector<20x32xf32> to vector<20xf32>
    %19 = vector.shape_cast %18 : vector<20xf32> to vector<20x1xf32>
    %c20_i32 = arith.constant 20 : i32
    %20 = arith.muli %arg0, %c20_i32 : i32
    %21 = tpu.iota {dimensions = array<i32: 0>} : vector<20x1xi32>
    %22 = vector.broadcast %20 : i32 to vector<20x1xi32>
    %23 = arith.addi %22, %21 : vector<20x1xi32>
    %c20_i32_7 = arith.constant 20 : i32
    %24 = vector.broadcast %c20_i32_7 : i32 to vector<20x1xi32>
    %25 = arith.cmpi slt, %23, %24 : vector<20x1xi32>
    %cst_8 = arith.constant 3.200000e+01 : f32
    %26 = vector.broadcast %cst_8 : f32 to vector<20x1xf32>
    %27 = arith.mulf %26, %9 : vector<20x1xf32>
    %28 = arith.subf %27, %11 : vector<20x1xf32>
    %cst_9 = arith.constant 0.000000e+00 : f32
    %29 = vector.broadcast %cst_9 : f32 to vector<20x1xf32>
    %30 = arith.select %25, %28, %29 : vector<20x1xi1>, vector<20x1xf32>
    %31 = arith.subf %9, %19 : vector<20x1xf32>
    %cst_10 = arith.constant 0.000000e+00 : f32
    %32 = vector.broadcast %cst_10 : f32 to vector<20x1xf32>
    %33 = arith.select %25, %31, %32 : vector<20x1xi1>, vector<20x1xf32>
    %34 = vector.shape_cast %30 : vector<20x1xf32> to vector<1x20x1xf32>
    %cst_11 = arith.constant dense<0.000000e+00> : vector<1xf32>
    %35 = vector.multi_reduction <add>, %34, %cst_11 [1, 2] : vector<1x20x1xf32> to vector<1xf32>
    %36 = vector.shape_cast %35 : vector<1xf32> to vector<1x1x1xf32>
    %37 = vector.extract %36[0, 0, 0] : f32 from vector<1x1x1xf32>
    %38 = vector.shape_cast %33 : vector<20x1xf32> to vector<1x20x1xf32>
    %cst_12 = arith.constant dense<0.000000e+00> : vector<1xf32>
    %39 = vector.multi_reduction <add>, %38, %cst_12 [1, 2] : vector<1x20x1xf32> to vector<1xf32>
    %40 = vector.shape_cast %39 : vector<1xf32> to vector<1x1x1xf32>
    %41 = vector.extract %40[0, 0, 0] : f32 from vector<1x1x1xf32>
    %42 = tpu.iota {dimensions = array<i32: 2>} : vector<1x8x128xi32>
    %c0_i32 = arith.constant 0 : i32
    %43 = vector.broadcast %c0_i32 : i32 to vector<1x8x128xi32>
    %44 = arith.cmpi eq, %42, %43 : vector<1x8x128xi32>
    %c1_i32 = arith.constant 1 : i32
    %45 = vector.broadcast %c1_i32 : i32 to vector<1x8x128xi32>
    %46 = arith.cmpi eq, %42, %45 : vector<1x8x128xi32>
    %cst_13 = arith.constant 0.000000e+00 : f32
    %47 = vector.broadcast %41 : f32 to vector<1x8x128xf32>
    %48 = vector.broadcast %cst_13 : f32 to vector<1x8x128xf32>
    %49 = arith.select %46, %47, %48 : vector<1x8x128xi1>, vector<1x8x128xf32>
    %50 = vector.broadcast %37 : f32 to vector<1x8x128xf32>
    %51 = arith.select %44, %50, %49 : vector<1x8x128xi1>, vector<1x8x128xf32>
    %c0_14 = arith.constant 0 : index
    %c0_15 = arith.constant 0 : index
    %c0_16 = arith.constant 0 : index
    %52 = vector.load %arg3[%c0_14, %c0_15, %c0_16] : memref<1x8x128xf32, #tpu.memory_space<vmem>>, vector<1x8x128xf32>
    tpu.vector_store %arg3[%c0_14, %c0_15, %c0_16], %51 {strides = array<i32>} : memref<1x8x128xf32, #tpu.memory_space<vmem>>, vector<1x8x128xf32>,
    return
  }
  func.func @transform_0(%arg0: i32) -> (i32, i32) {
    %c0_i32 = arith.constant 0 : i32
    %c0_i32_0 = arith.constant 0 : i32
    return %arg0, %c0_i32 : i32, i32
  }
  func.func @transform_1(%arg0: i32) -> (i32, i32) {
    %c0_i32 = arith.constant 0 : i32
    %c0_i32_0 = arith.constant 0 : i32
    return %arg0, %c0_i32 : i32, i32
  }
  func.func @transform_2(%arg0: i32) -> (i32, i32, i32) {
    %c0_i32 = arith.constant 0 : i32
    %c0_i32_0 = arith.constant 0 : i32
    %c0_i32_1 = arith.constant 0 : i32
    return %arg0, %c0_i32, %c0_i32_0 : i32, i32, i32
  }
}

</mosaic_0001>

<llo_original>
// kernel: tpu_custom_call.1
$region0: #{tpu_custom_call.1}
  #allocation0 [shape = 'u32[]', space=smem, size = 0x4, offset = 0x4, fixed_abs, tag = 'smem constant byte address 0x4 - core index']
  #allocation1 [shape = 'u32[144,128]{1,0:T(1,128)}', space=vmem, size = 0x12000, scoped, tag = 'internal scratch']
  %s0 = inlined_call_operand.vmem [shape: f32[20,32], index: 0, kind: input, shape index: {}]
  %s1 = inlined_call_operand.vmem [shape: s32[20,1], index: 1, kind: input, shape index: {}]
  %s2 = inlined_call_operand.hbm [shape: f32[1,8,128], index: 2, kind: output, shape index: {}]
  %s3 = sld [smem:[#allocation0]]
  $region18: #{tpu_custom_call.1} parent=0
    _
  %s5 = ssub.s32 1, %s3
  %s6 = scalar_select 0, %s5, %s3
  $region1: #{tpu_custom_call.1} parent=0
    #allocation2 [shape = 'u8[4096]{0}', space=vmem, size = 0x1000, scoped, tag = 'output window, operand 0, single buffered']
    #allocation3 [shape = 's32[1]{0}', space=sflag, size = 0x4, scoped, tag = 'scoped memory for tpu_custom_call.1']
    %7 = vsyncpa [#allocation3], 0
    // Predicated region
    $region2: #{tpu_custom_call.1} parent=1 // pred_check
      _
    $region3: #{tpu_custom_call.1} parent=1 // pred_check_branch
      %9 = sbr.rel (0) target = $region5
    $region4: #{tpu_custom_call.1} parent=1 // pred_region
      _
    $region5: #{tpu_custom_call.1} parent=1 // pred_fallthru
      _
    // Predicated region
    $region6: #{tpu_custom_call.1} parent=1 // pred_check
      _
    $region7: #{tpu_custom_call.1} parent=1 // pred_check_branch
      %11 = sbr.rel (0) target = $region9
    $region8: #{tpu_custom_call.1} parent=1 // pred_region
      _
    $region9: #{tpu_custom_call.1} parent=1 // pred_fallthru
      _
    %v12 = vld [vmem:[%s0] sm:$0xff]
    %v13 = vld [vmem:[%s0 + $0x8] sm:$0xff]
    %v14 = vld [vmem:[%s0 + $0x10] sm:$0xf]
    %vm15 = vcmask 261120
    %v16 = vsel %vm15, %v12, -inf
    %17 = vmax.xlane.f32.xlu0 %v16
    %v18 = vpop.xlane.xlu0 %17
    %v19 = vsel %vm15, %v13, -inf
    %20 = vmax.xlane.f32.xlu0 %v19
    %v21 = vpop.xlane.xlu0 %20
    %vm22 = vcmask 257024
    %v23 = vsel %vm22, %v14, -inf
    %24 = vmax.xlane.f32.xlu0 %v23
    %v25 = vpop.xlane.xlu0 %24
    %v26 = vsub.f32 %v12, %v18
    %v27 = vsub.f32 %v13, %v21
    %v28 = vsub.f32 %v14, %v25
    %v29 = vmul.f32 %v26, 1.442695
    %v30 = vpow.pop %v29
    %v31 = vmul.f32 %v27, 1.442695
    %v32 = vpow.pop %v31
    %v33 = vmul.f32 %v28, 1.442695
    %v34 = vpow.pop %v33
    %v35 = vsel %vm15, %v30, 0.0
    %36 = vadd.xlane.f32.xlu0 %v35
    %v37 = vpop.xlane.xlu0 %36
    %v38 = vsel %vm15, %v32, 0.0
    %39 = vadd.xlane.f32.xlu0 %v38
    %v40 = vpop.xlane.xlu0 %39
    %v41 = vsel %vm22, %v34, 0.0
    %42 = vadd.xlane.f32.xlu0 %v41
    %v43 = vpop.xlane.xlu0 %42
    %v44 = vlog2.pop %v37
    %v45 = vmul.f32 %v44, 0.6931472
    %v46 = vlog2.pop %v40
    %v47 = vmul.f32 %v46, 0.6931472
    %v48 = vlog2.pop %v43
    %v49 = vmul.f32 %v48, 0.6931472
    %v50 = vadd.f32 %v18, %v45
    %v51 = vadd.f32 %v21, %v47
    %v52 = vadd.f32 %v25, %v49
    %v53 = vsel %vm15, %v12, 0.0
    %54 = vadd.xlane.f32.xlu0 %v53
    %v55 = vpop.xlane.xlu0 %54
    %v56 = vsel %vm15, %v13, 0.0
    %57 = vadd.xlane.f32.xlu0 %v56
    %v58 = vpop.xlane.xlu0 %57
    %v59 = vsel %vm22, %v14, 0.0
    %60 = vadd.xlane.f32.xlu0 %v59
    %v61 = vpop.xlane.xlu0 %60
    %v62 = vlaneseq
    %v63 = vand.u32 %v62, 127
    %v64 = vld [vmem:[%s1] sm:$0xff]
    %v65 = vld [vmem:[%s1 + $0x8] sm:$0xff]
    %v66 = vld [vmem:[%s1 + $0x10] sm:$0xf]
    %67 = vset.pattern.permute.xlu0 0
    %68 = vperm.xlu0 %67, %v64
    %v69 = vpop.permute.xlu0 %68
    %70 = vset.pattern.permute.xlu0 0
    %71 = vperm.xlu0 %70, %v65
    %v72 = vpop.permute.xlu0 %71
    %73 = vset.pattern.permute.xlu0 0
    %74 = vperm.xlu0 %73, %v66
    %v75 = vpop.permute.xlu0 %74
    %vm76 = vcmp.eq.s32.totalorder %v63, %v69
    %vm77 = vcmp.eq.s32.totalorder %v63, %v72
    %vm78 = vcmp.eq.s32.totalorder %v63, %v75
    %v79 = vsel %vm76, %v12, 0.0
    %v80 = vsel %vm77, %v13, 0.0
    %v81 = vsel %vm78, %v14, 0.0
    %v82 = vsel %vm15, %v79, 0.0
    %83 = vadd.xlane.f32.xlu0 %v82
    %v84 = vpop.xlane.xlu0 %83
    %v85 = vsel %vm15, %v80, 0.0
    %86 = vadd.xlane.f32.xlu0 %v85
    %v87 = vpop.xlane.xlu0 %86
    %v88 = vsel %vm22, %v81, 0.0
    %89 = vadd.xlane.f32.xlu0 %v88
    %v90 = vpop.xlane.xlu0 %89
    %s91 = smul.u32 0, 20
    %v92 = vlaneseq
    %v93 = vshrl.u32 %v92, 7
    %v94 = vadd.s32 %v93, 8
    %v95 = vadd.s32 %v93, 16
    %v96 = vstv %s91
    %v97 = vadd.s32 %v96, %v93
    %v98 = vadd.s32 %v96, %v94
    %v99 = vadd.s32 %v96, %v95
    %vm100 = vcmp.lt.s32.totalorder %v97, 20
    %vm101 = vcmp.lt.s32.totalorder %v98, 20
    %vm102 = vcmp.lt.s32.totalorder %v99, 20
    %v103 = vmul.f32 %v50, 32.0
    %v104 = vmul.f32 %v51, 32.0
    %v105 = vmul.f32 %v52, 32.0
    %v106 = vsub.f32 %v103, %v55
    %v107 = vsub.f32 %v104, %v58
    %v108 = vsub.f32 %v105, %v61
    %v109 = vsel %vm100, %v106, 0.0
    %v110 = vsel %vm101, %v107, 0.0
    %v111 = vsel %vm102, %v108, 0.0
    %v112 = vsub.f32 %v50, %v84
    %v113 = vsub.f32 %v51, %v87
    %v114 = vsub.f32 %v52, %v90
    %v115 = vsel %vm100, %v112, 0.0
    %v116 = vsel %vm101, %v113, 0.0
    %v117 = vsel %vm102, %v114, 0.0
    %vm118 = vcmask 7168
    %v119 = vsel %vm118, %v109, 0.0
    %v120 = vsel %vm118, %v110, 0.0
    %v121 = vadd.f32 %v119, %v120
    %vm122 = vcmask 3072
    %v123 = vsel %vm122, %v111, 0.0
    %v124 = vadd.f32 %v121, %v123
    %125 = vadd.xlane.f32.xlu0 %v124
    %v126 = vpop.xlane.xlu0 %125
    %v127 = vrot.slane %v126, 4
    %v128 = vadd.f32 %v126, %v127
    %v129 = vrot.slane %v128, 2
    %v130 = vadd.f32 %v128, %v129
    %v131 = vrot.slane %v130, 1
    %v132 = vadd.f32 %v130, %v131
    %s133 = vtos %v132
    %v134 = vsel %vm118, %v115, 0.0
    %v135 = vsel %vm118, %v116, 0.0
    %v136 = vadd.f32 %v134, %v135
    %v137 = vsel %vm122, %v117, 0.0
    %v138 = vadd.f32 %v136, %v137
    %139 = vadd.xlane.f32.xlu0 %v138
    %v140 = vpop.xlane.xlu0 %139
    %v141 = vrot.slane %v140, 4
    %v142 = vadd.f32 %v140, %v141
    %v143 = vrot.slane %v142, 2
    %v144 = vadd.f32 %v142, %v143
    %v145 = vrot.slane %v144, 1
    %v146 = vadd.f32 %v144, %v145
    %s147 = vtos %v146
    %vm148 = vcmp.eq.s32.totalorder %v63, 0
    %vm149 = vcmp.eq.s32.totalorder %v63, 1
    %v150 = vstv %s147
    %v151 = vsel %vm149, %v150, 0.0
    %v152 = vstv %s133
    %v153 = vsel %vm148, %v152, %v151
    %154 = vst [vmem:[#allocation2] sm:$0xff] %v153
    // Predicated region
    $region10: #{tpu_custom_call.1} parent=1 // pred_check
      _
    $region11: #{tpu_custom_call.1} parent=1 // pred_check_branch
      %156 = sbr.rel (0) target = $region13
    $region12: #{tpu_custom_call.1} parent=1 // pred_region
      %s158 = ssub.s32 128, 128
      %159 = vsyncadd [#allocation3], %s158
      %s161 = sshll.u32 [#allocation2], 4
      %s162 = int_to_ptr.vmem [resolvable:$true] %s161
      %164 = dma.vmem_to_hbm [thread:$0]  %s162, 128, %s2, [#allocation3]
    $region13: #{tpu_custom_call.1} parent=1 // pred_fallthru
      _
    // Predicated region
    $region14: #{tpu_custom_call.1} parent=1 // pred_check
      _
    $region15: #{tpu_custom_call.1} parent=1 // pred_check_branch
      %166 = sbr.rel (0) target = $region17
    $region16: #{tpu_custom_call.1} parent=1 // pred_region
      %167 = dma.done [#allocation3], 128
    $region17: #{tpu_custom_call.1} parent=1 // pred_fallthru
      _
    %168 = vsyncpa [#allocation3], 1

</llo_original>
